<compile_context>
chip_gen: v7x
topology: tpu7x:2x2x1
jax: 0.10.0
libtpu: 0.0.40
codegen_flags: <defaults>
</compile_context>

<pallas_src>
import jax
import jax.numpy as jnp
from jax.experimental import pallas as pl
from jax.experimental.pallas import tpu as pltpu


# ----------------------------- helpers --------------------------------------

def _round_up(x, m):
    return ((x + m - 1) // m) * m


def _cdiv(a, b):
    return -(-a // b)


def _vmem_capacity_bytes():
    """Physical per-core VMEM, with a conservative (v7x-sized) fallback."""
    try:
        info = pltpu.get_tpu_info()
        cap = getattr(info, "vmem_capacity_bytes", None)
        if cap:
            return int(cap)
    except Exception:
        pass
    return 64 * 1024 * 1024


_VMEM_CAP = _vmem_capacity_bytes()
_BIG_VMEM = _VMEM_CAP >= 100 * 1024 * 1024          # v5e / v6e (128 MiB)

# Per-weight-buffer VMEM budget and max lane-dense output tile width.
# Bigger tiles on 128 MiB chips halve the grid-step count; the smaller
# budget keeps double-buffered tiles comfortably inside v7x's 64 MiB.
_WEIGHT_TILE_BUDGET = (16 if _BIG_VMEM else 8) * 1024 * 1024
_TN_MAX = 1024 if _BIG_VMEM else 512
# If the whole (padded) activation fits this budget it stays resident in a
# single row tile (x DMA'd exactly once per call).
_X_TILE_BUDGET = (8 if _BIG_VMEM else 4) * 1024 * 1024
_TM_MAX = 256                                        # fallback row-tile size


def _pick_weight_tiles(V, H, itemsize):
    """Choose (tn, tk, V_pad, H_pad) from the weight shape / dtype."""
    V128 = _round_up(V, 128)
    # Minimal-padding lane-dense tn: split round_up(V,128) into equal
    # 128-aligned tiles no wider than _TN_MAX.
    tn_max = min(_TN_MAX, V128)
    nt = _cdiv(V128, tn_max)
    tn = _round_up(_cdiv(V128, nt), 128)
    V_pad = tn * nt

    # Take the whole hidden dim in one VMEM tile when it fits the budget
    # (drops the reduction grid axis); otherwise chunk in 128-multiples.
    if tn * H * itemsize <= _WEIGHT_TILE_BUDGET:
        tk = H
        H_pad = H
    else:
        H128 = _round_up(H, 128)
        tk_cap = max(128, (_WEIGHT_TILE_BUDGET // (tn * itemsize)) // 128 * 128)
        kt = _cdiv(H128, tk_cap)
        tk = _round_up(_cdiv(H128, kt), 128)
        H_pad = tk * kt
    return tn, tk, V_pad, H_pad


# ----------------------------- kernels --------------------------------------

def _dot_nn(x, w):
    """(tm, tk) @ (tk, tn) -> (tm, tn) with f32 accumulation on the MXU."""
    if x.dtype != w.dtype:
        # Only ever cast the small activation tile; the weight tile keeps
        # its native dtype all the way from HBM into the MXU.
        x = x.astype(w.dtype)
    return jnp.dot(x, w, preferred_element_type=jnp.float32)


def _matmul_kernel(x_ref, w_ref, o_ref):
    # Full reduction dim resident in VMEM: no accumulator, no k bookkeeping.
    o_ref[...] = _dot_nn(x_ref[...], w_ref[...]).astype(o_ref.dtype)


def _matmul_kernel_acc(x_ref, w_ref, o_ref, acc_ref):
    # grid = (V_tiles, S_tiles, K_tiles); reduction axis (K) is last.
    @pl.when(pl.program_id(2) == 0)
    def _():
        acc_ref[...] = jnp.zeros_like(acc_ref)

    acc_ref[...] += _dot_nn(x_ref[...], w_ref[...])

    @pl.when(pl.program_id(2) == pl.num_programs(2) - 1)
    def _():
        o_ref[...] = acc_ref[...].astype(o_ref.dtype)


def pallas_matmul_nn(x, w_t, *, tm, tn, tk):
    """x: (S, H), w_t: (H, V) (pre-transposed, native dtype) -> (S, V) f32.

    All dims must already be padded so S % tm == 0, V % tn == 0, H % tk == 0.
    tk == H selects the no-accumulator weight-streaming path.
    """
    S, H = x.shape
    H2, V = w_t.shape
    assert H == H2
    assert S % tm == 0 and V % tn == 0 and H % tk == 0

    s_tiles, v_tiles = S // tm, V // tn
    # Honest traffic estimate: x is re-streamed per V tile only when S spans
    # several row tiles; the weight is re-streamed per S tile only on the
    # split-reduction path.
    x_reads = 1 if s_tiles == 1 else v_tiles
    w_reads = 1 if (tk == H or s_tiles == 1) else s_tiles
    cost = pl.CostEstimate(
        flops=2 * S * H * V,
        transcendentals=0,
        bytes_accessed=(x.size * x.dtype.itemsize * x_reads
                        + w_t.size * w_t.dtype.itemsize * w_reads
                        + S * V * 4),
    )

    # Double-buffered x & w tiles + double-buffered f32 output + f32 acc.
    vmem_needed = (2 * (tm * tk * x.dtype.itemsize + tk * tn * w_t.dtype.itemsize)
                   + 2 * tm * tn * 4 + tm * tn * 4)
    vmem_limit = int(min(int(_VMEM_CAP * 3) // 4,
                         max(32 * 1024 * 1024, (vmem_needed * 5) // 4)))

    if tk == H:
        # Pure weight-streaming matmul.  Large V axis first so megacore
        # chips can shard the vocab tiles across TensorCores.
        # TODO(synk): on v7x, pltpu.CORE_PARALLEL on this axis (or an
        # explicit pl.core_map 2-core mesh) would guarantee 2-TC sharding.
        grid = (v_tiles, s_tiles)
        return pl.pallas_call(
            _matmul_kernel,
            out_shape=jax.ShapeDtypeStruct((S, V), jnp.float32),
            grid_spec=pltpu.PrefetchScalarGridSpec(
                num_scalar_prefetch=0,
                grid=grid,
                in_specs=[
                    pl.BlockSpec((tm, tk), lambda j, i: (i, 0)),
                    pl.BlockSpec((tk, tn), lambda j, i: (0, j)),
                ],
                out_specs=pl.BlockSpec((tm, tn), lambda j, i: (i, j)),
            ),
            compiler_params=pltpu.CompilerParams(
                dimension_semantics=("parallel", "parallel"),
                vmem_limit_bytes=vmem_limit,
            ),
            cost_estimate=cost,
        )(x, w_t)

    grid = (v_tiles, s_tiles, H // tk)
    return pl.pallas_call(
        _matmul_kernel_acc,
        out_shape=jax.ShapeDtypeStruct((S, V), jnp.float32),
        grid_spec=pltpu.PrefetchScalarGridSpec(
            num_scalar_prefetch=0,
            grid=grid,
            in_specs=[
                pl.BlockSpec((tm, tk), lambda j, i, k: (i, k)),
                pl.BlockSpec((tk, tn), lambda j, i, k: (k, j)),
            ],
            out_specs=pl.BlockSpec((tm, tn), lambda j, i, k: (i, j)),
            scratch_shapes=[pltpu.VMEM((tm, tn), jnp.float32)],
        ),
        compiler_params=pltpu.CompilerParams(
            dimension_semantics=("parallel", "parallel", "arbitrary"),
            vmem_limit_bytes=vmem_limit,
        ),
        cost_estimate=cost,
    )(x, w_t)


# ----------------------------- module wrapper --------------------------------

class MyLinearPallas:
    """JAX/Pallas equivalent of the PyTorch MyLinear module."""

    def __init__(self, weight=None):
        self.isLoaded = False
        if weight is not None:
            self.load_weight(weight)

    def load_weight(self, weight):
        """weight: (V, H) in native nn.Linear layout, kept in its own dtype."""
        weight = jnp.asarray(weight)
        V, H = weight.shape
        self.V, self.H = V, H
        self.wdtype = weight.dtype
        itemsize = jnp.dtype(weight.dtype).itemsize
        self.tn, self.tk, self.V_pad, self.H_pad = _pick_weight_tiles(
            V, H, itemsize)
        if (self.V_pad, self.H_pad) != (V, H):
            weight = jnp.pad(
                weight, ((0, self.V_pad - V), (0, self.H_pad - H)))
        # Pad AND transpose once at load time (no per-call work, no f32
        # upcast): stored as (H_pad, V_pad) so the kernel is a plain NN
        # matmul with lane-dense weight/output tiles.
        self.weight_t = jnp.asarray(weight.T)
        self.isLoaded = True

    def emptyLayer(self):
        if hasattr(self, "weight_t"):
            del self.weight_t
        self.isLoaded = False

    def __call__(self, x):
        if not self.isLoaded:
            # TODO(synk): original hardcodes zeros((1, 250000)) regardless of
            # the eventual output width; kept verbatim for parity.
            return jnp.zeros((1, 250000), dtype=jnp.float32)

        # TODO(synk): torch's x.squeeze() collapses *all* size-1 dims (breaks
        # when seq==1); we fold leading dims into the row axis instead, which
        # is equivalent for the intended (1, S, H) input and robust at S==1.
        xx = x.reshape(-1, x.shape[-1])
        # Run the MXU in the weight's native dtype (bf16 x bf16 -> f32 acc);
        # never widen either HBM stream.  Output stays f32 like the original.
        if jnp.issubdtype(self.wdtype, jnp.floating):
            xx = xx.astype(self.wdtype)
        else:
            # TODO(synk): int8/fp8 weights would need per-tile scales; not
            # implemented here.
            xx = xx.astype(jnp.float32)
        S = xx.shape[0]
        itemsize = jnp.dtype(xx.dtype).itemsize

        S_pad = _round_up(S, 8)
        # Keep the whole activation resident in one row tile whenever it fits
        # the budget (and its f32 output tile stays small): the x block index
        # is then constant across the V grid axis -> x DMA'd exactly once.
        tm_cap = min(_X_TILE_BUDGET // max(1, self.H_pad * itemsize),
                     _X_TILE_BUDGET // max(1, self.tn * 4))
        tm_cap = max(8, (tm_cap // 8) * 8)
        if S_pad <= tm_cap:
            tm = S_pad
        else:
            tm = _TM_MAX
            S_pad = _round_up(S_pad, tm)
        if (S_pad, self.H_pad) != xx.shape:
            xx = jnp.pad(xx, ((0, S_pad - S), (0, self.H_pad - self.H)))

        y = pallas_matmul_nn(xx, self.weight_t, tm=tm, tn=self.tn, tk=self.tk)
        y = y[:S, : self.V]                                   # (S, V)
        return y[None, ...]                                   # (1, S, V)


# ----------------------------- demo / checks ---------------------------------

if __name__ == "__main__":
    key = jax.random.PRNGKey(0)
    k_x, k_w, k_x2, k_w2 = jax.random.split(key, 4)

    # Small shapes consistent with the module: (batch=1, seq=8, hidden=32),
    # "vocab" 256, f32 weight.
    S, H, V = 8, 32, 256
    x = jax.random.normal(k_x, (1, S, H), dtype=jnp.float32)
    weight = jax.random.normal(k_w, (V, H), dtype=jnp.float32) * 0.02

    layer = MyLinearPallas(weight)
    y = jax.block_until_ready(layer(x))
    ref = (x.reshape(S, H) @ weight.T)[None, ...]
    assert y.shape == (1, S, V)
    assert jnp.allclose(y, ref, atol=1e-4, rtol=1e-4)

    # Ragged shapes (S, H, V not multiples of the tile sizes) exercise the
    # pad-once / slice-output path; a bf16 weight exercises the native-bf16
    # MXU path (activation cast down in the wrapper, f32 accumulation).
    S2, H2, V2 = 5, 48, 300
    x2 = jax.random.normal(k_x2, (1, S2, H2), dtype=jnp.float32)
    w2 = (jax.random.normal(k_w2, (V2, H2), dtype=jnp.float32)
          * 0.02).astype(jnp.bfloat16)
    layer2 = MyLinearPallas(w2)
    y2 = jax.block_until_ready(layer2(x2))
    ref2 = (x2.reshape(S2, H2) @ w2.astype(jnp.float32).T)[None, ...]
    assert y2.shape == (1, S2, V2)
    assert jnp.allclose(y2, ref2, atol=2e-2, rtol=2e-2)

    # Split-reduction path (tk < H) + multi-V-tile grid sanity check.
    xk = jax.random.normal(k_x, (8, 256), dtype=jnp.float32)
    wk_t = jax.random.normal(k_w, (256, 256), dtype=jnp.float32) * 0.02
    yk = jax.block_until_ready(
        pallas_matmul_nn(xk, wk_t, tm=8, tn=128, tk=128))
    assert jnp.allclose(yk, xk @ wk_t, atol=1e-4, rtol=1e-4)

    # Not-loaded branch.
    empty = MyLinearPallas()
    z = jax.block_until_ready(empty(x))
    assert z.shape == (1, 250000)

    print("KERNEL_OK")
</pallas_src>

<mosaic_0001>
module attributes {stable_mosaic.version = 11 : i64} {
  func.func @_matmul_kernel(%arg0: i32, %arg1: i32, %arg2: memref<8x32xf32, #tpu.memory_space<vmem>>, %arg3: memref<32x256xf32, #tpu.memory_space<vmem>>, %arg4: memref<8x256xf32, #tpu.memory_space<vmem>>) attributes {dimension_semantics = [#tpu.dimension_semantics<parallel>, #tpu.dimension_semantics<parallel>], iteration_bounds = array<i64: 1, 1>, scalar_prefetch = 0 : i64, scratch_operands = 0 : i64, tpu.core_type = #tpu.core_type<tc>, window_params = [{transform_indices = @transform_0, window_bounds = array<i64: 8, 32>}, {transform_indices = @transform_1, window_bounds = array<i64: 32, 256>}, {transform_indices = @transform_2, window_bounds = array<i64: 8, 256>}]} {
    %c0 = arith.constant 0 : index
    %c0_0 = arith.constant 0 : index
    %0 = vector.load %arg2[%c0, %c0_0] : memref<8x32xf32, #tpu.memory_space<vmem>>, vector<8x32xf32>
    %c0_1 = arith.constant 0 : index
    %c0_2 = arith.constant 0 : index
    %1 = vector.load %arg3[%c0_1, %c0_2] : memref<32x256xf32, #tpu.memory_space<vmem>>, vector<32x256xf32>
    %cst = arith.constant dense<0.000000e+00> : vector<8x256xf32>
    %2 = tpu.matmul %0, %1, %cst {dimension_numbers = #tpu.dot_dimension_numbers<[1], [0], [0], [1], [0, 0, 1, 1], [], []>} : vector<8x32xf32>, vector<32x256xf32>, vector<8x256xf32> -> vector<8x256xf32>
    %c0_3 = arith.constant 0 : index
    %c0_4 = arith.constant 0 : index
    %3 = vector.load %arg4[%c0_3, %c0_4] : memref<8x256xf32, #tpu.memory_space<vmem>>, vector<8x256xf32>
    tpu.vector_store %arg4[%c0_3, %c0_4], %2 {strides = array<i32>} : memref<8x256xf32, #tpu.memory_space<vmem>>, vector<8x256xf32>,
    return
  }
  func.func @transform_0(%arg0: i32, %arg1: i32) -> (i32, i32) {
    %c0_i32 = arith.constant 0 : i32
    %c0_i32_0 = arith.constant 0 : i32
    return %arg1, %c0_i32 : i32, i32
  }
  func.func @transform_1(%arg0: i32, %arg1: i32) -> (i32, i32) {
    %c0_i32 = arith.constant 0 : i32
    %c0_i32_0 = arith.constant 0 : i32
    return %c0_i32, %arg0 : i32, i32
  }
  func.func @transform_2(%arg0: i32, %arg1: i32) -> (i32, i32) {
    %c0_i32 = arith.constant 0 : i32
    return %arg1, %arg0 : i32, i32
  }
}

</mosaic_0001>

<llo_original>
// kernel: tpu_custom_call.1
$region0: #{tpu_custom_call.1}
  #allocation0 [shape = 'u32[]', space=smem, size = 0x4, offset = 0x4, fixed_abs, tag = 'smem constant byte address 0x4 - core index']
  #allocation1 [shape = 'u32[144,128]{1,0:T(1,128)}', space=vmem, size = 0x12000, scoped, tag = 'internal scratch']
  %s0 = inlined_call_operand.hbm [shape: f32[8,32], index: 0, kind: input, shape index: {}]
  %s1 = inlined_call_operand.hbm [shape: f32[32,256], index: 1, kind: input, shape index: {}]
  %s2 = inlined_call_operand.hbm [shape: f32[8,256], index: 2, kind: output, shape index: {}]
  %s3 = sld [smem:[#allocation0]]
  $region26: #{tpu_custom_call.1} parent=0
    _
  %s5 = ssub.s32 1, %s3
  %s6 = scalar_select 0, %s5, %s3
  $region1: #{tpu_custom_call.1} parent=0
    #allocation2 [shape = 'u8[4096]{0}', space=vmem, size = 0x1000, scoped, tag = 'input window, operand 0, single buffered']
    #allocation3 [shape = 's32[1]{0}', space=sflag, size = 0x4, scoped, tag = 'scoped memory for tpu_custom_call.1']
    #allocation4 [shape = 's32[1]{0}', space=sflag, size = 0x4, scoped, tag = 'scoped memory for tpu_custom_call.1']
    #allocation5 [shape = 'u8[32768]{0}', space=vmem, size = 0x8000, scoped, tag = 'input window, operand 1, single buffered']
    #allocation6 [shape = 's32[1]{0}', space=sflag, size = 0x4, scoped, tag = 'scoped memory for tpu_custom_call.1']
    #allocation7 [shape = 'u8[8192]{0}', space=vmem, size = 0x2000, scoped, tag = 'output window, operand 0, single buffered']
    %7 = vsyncpa [#allocation3], 0
    %8 = vsyncpa [#allocation6], 0
    %9 = vsyncpa [#allocation4], 0
    // Predicated region
    $region2: #{tpu_custom_call.1} parent=1 // pred_check
      _
    $region3: #{tpu_custom_call.1} parent=1 // pred_check_branch
      %11 = sbr.rel (0) target = $region5
    $region4: #{tpu_custom_call.1} parent=1 // pred_region
      %s13 = ssub.s32 128, 128
      %14 = vsyncadd [#allocation3], %s13
      %s16 = sshll.u32 [#allocation2], 4
      %s17 = int_to_ptr.vmem [resolvable:$true] %s16
      %19 = dma.hbm_to_vmem [thread:$0]  %s0, 128, %s17, [#allocation3]
    $region5: #{tpu_custom_call.1} parent=1 // pred_fallthru
      _
    // Predicated region
    $region6: #{tpu_custom_call.1} parent=1 // pred_check
      _
    $region7: #{tpu_custom_call.1} parent=1 // pred_check_branch
      %21 = sbr.rel (0) target = $region9
    $region8: #{tpu_custom_call.1} parent=1 // pred_region
      %s23 = ssub.s32 1024, 1024
      %24 = vsyncadd [#allocation6], %s23
      %s25 = sshll.u32 [#allocation5], 4
      %s26 = int_to_ptr.vmem [resolvable:$true] %s25
      %31 = dma.hbm_to_vmem [thread:$0]  %s1, 1024, %s26, [#allocation6], 256, 256, 16
    $region9: #{tpu_custom_call.1} parent=1 // pred_fallthru
      _
    // Predicated region
    $region10: #{tpu_custom_call.1} parent=1 // pred_check
      _
    $region11: #{tpu_custom_call.1} parent=1 // pred_check_branch
      %33 = sbr.rel (0) target = $region13
    $region12: #{tpu_custom_call.1} parent=1 // pred_region
      %34 = dma.done [#allocation3], 128
    $region13: #{tpu_custom_call.1} parent=1 // pred_fallthru
      _
    // Predicated region
    $region14: #{tpu_custom_call.1} parent=1 // pred_check
      _
    $region15: #{tpu_custom_call.1} parent=1 // pred_check_branch
      %36 = sbr.rel (0) target = $region17
    $region16: #{tpu_custom_call.1} parent=1 // pred_region
      %37 = dma.done [#allocation6], 1024
    $region17: #{tpu_custom_call.1} parent=1 // pred_fallthru
      _
    %v38 = vld [vmem:[#allocation2] sm:$0xff]
    %v39 = vld [vmem:[#allocation5] sm:$0xff]
    %v40 = vld [vmem:[#allocation5 + $0x8] sm:$0xff]
    %v41 = vld [vmem:[#allocation5 + $0x10] sm:$0xff]
    %v42 = vld [vmem:[#allocation5 + $0x18] sm:$0xff]
    %v43 = vld [vmem:[#allocation5 + $0x20] sm:$0xff]
    %v44 = vld [vmem:[#allocation5 + $0x28] sm:$0xff]
    %v45 = vld [vmem:[#allocation5 + $0x30] sm:$0xff]
    %v46 = vld [vmem:[#allocation5 + $0x38] sm:$0xff]
    %vm47 = vcmask 261120
    %v49 = vsel %vm47, %v38, 0
    %51 = vmatprep.subr.mxu0 %v40
    %52 = vmatpush1.msra.mxu0 %v39
    %53 = vmatprep.subr.mxu0 %v42
    %54 = vmatpush1.msra.mxu0 %v41
    %55 = vmatprep.subr.mxu0 %v44
    %56 = vmatpush1.msra.mxu0 %v43
    %57 = vmatprep.subr.mxu0 %v46
    %58 = vmatpush1.msra.mxu0 %v45
    %59 = vmatprep.subr.mxu0 0.0
    %60 = vmatpush1.msra.mxu0 0.0
    %61 = vmatprep.subr.mxu0 0.0
    %62 = vmatpush1.msra.mxu0 0.0
    %63 = vmatprep.subr.mxu0 0.0
    %64 = vmatpush1.msra.mxu0 0.0
    %65 = vmatprep.subr.mxu0 0.0
    %66 = vmatpush1.msra.mxu0 0.0
    %67 = vmatprep.subr.mxu0 0.0
    %68 = vmatpush1.msra.mxu0 0.0
    %69 = vmatprep.subr.mxu0 0.0
    %70 = vmatpush1.msra.mxu0 0.0
    %71 = vmatprep.subr.mxu0 0.0
    %72 = vmatpush1.msra.mxu0 0.0
    %73 = vmatprep.subr.mxu0 0.0
    %74 = vmatpush1.msra.mxu0 0.0
    %75 = vmatprep.subr.mxu0 0.0
    %76 = vmatpush1.msra.mxu0 0.0
    %77 = vmatprep.subr.mxu0 0.0
    %78 = vmatpush1.msra.mxu0 0.0
    %79 = vmatprep.subr.mxu0 0.0
    %80 = vmatpush1.msra.mxu0 0.0
    %81 = vmatprep.subr.mxu0 0.0
    %82 = vmatpush1.msra.mxu0 0.0
    %83 = vmatprep.subr.mxu0 0.0
    %84 = vmatpush1.msra.mxu0 0.0
    %85 = vmatprep.subr.mxu0 0.0
    %86 = vmatpush1.msra.mxu0 0.0
    %87 = vmatprep.subr.mxu0 0.0
    %88 = vmatpush1.msra.mxu0 0.0
    %89 = vmatprep.subr.mxu0 0.0
    %90 = vmatpush1.msra.mxu0 0.0
    %91 = vmatprep.subr.mxu0 0.0
    %92 = vmatpush1.msra.mxu0 0.0
    %93 = vmatprep.subr.mxu0 0.0
    %94 = vmatpush1.msra.mxu0 0.0
    %95 = vmatprep.subr.mxu0 0.0
    %96 = vmatpush1.msra.mxu0 0.0
    %97 = vmatprep.subr.mxu0 0.0
    %98 = vmatpush1.msra.mxu0 0.0
    %99 = vmatprep.subr.mxu0 0.0
    %100 = vmatpush1.msra.mxu0 0.0
    %101 = vmatprep.subr.mxu0 0.0
    %102 = vmatpush1.msra.mxu0 0.0
    %103 = vmatprep.subr.mxu0 0.0
    %104 = vmatpush1.msra.mxu0 0.0
    %105 = vmatprep.subr.mxu0 0.0
    %106 = vmatpush1.msra.mxu0 0.0
    %107 = vmatprep.subr.mxu0 0.0
    %108 = vmatpush1.msra.mxu0 0.0
    %109 = vmatprep.subr.mxu0 0.0
    %110 = vmatpush1.msra.mxu0 0.0
    %111 = vmatprep.subr.mxu0 0.0
    %112 = vmatpush1.msra.mxu0 0.0
    %113 = vmatprep.subr.mxu0 0.0
    %114 = vmatpush1.msra.mxu0 0.0
    %115 = vmatprep.mubr.f32.mxu0 0.0
    %116 = vmatmul.mubr.f32.gmra.mrb[0].mxu0 %v49
    %v117 = vpop.f32.mrb[0].mxu0
    %v118 = vadd.f32 0.0, %v117
    %v119 = vpop.f32.mrb[0].mxu0
    %v120 = vadd.f32 0.0, %v119
    %121 = vdwg.mxu0
    %122 = vst [vmem:[#allocation7] sm:$0xff] %v118
    %123 = vst [vmem:[#allocation7 + $0x8] sm:$0xff] %v120
    // Predicated region
    $region18: #{tpu_custom_call.1} parent=1 // pred_check
      _
    $region19: #{tpu_custom_call.1} parent=1 // pred_check_branch
      %125 = sbr.rel (0) target = $region21
    $region20: #{tpu_custom_call.1} parent=1 // pred_region
      %s127 = ssub.s32 256, 256
      %128 = vsyncadd [#allocation4], %s127
      %s130 = sshll.u32 [#allocation7], 4
      %s131 = int_to_ptr.vmem [resolvable:$true] %s130
      %133 = dma.vmem_to_hbm [thread:$0]  %s131, 256, %s2, [#allocation4]
    $region21: #{tpu_custom_call.1} parent=1 // pred_fallthru
      _
    // Predicated region
    $region22: #{tpu_custom_call.1} parent=1 // pred_check
      _
    $region23: #{tpu_custom_call.1} parent=1 // pred_check_branch
      %135 = sbr.rel (0) target = $region25
    $region24: #{tpu_custom_call.1} parent=1 // pred_region
      %136 = dma.done [#allocation4], 256
    $region25: #{tpu_custom_call.1} parent=1 // pred_fallthru
      _
    %137 = vsyncpa [#allocation3], 1
    %138 = vsyncpa [#allocation6], 1
    %139 = vsyncpa [#allocation4], 1

</llo_original>
